<compile_context>
chip_gen: v7x
topology: tpu7x:2x2x1
jax: 0.10.0
libtpu: 0.0.40
codegen_flags: <defaults>
</compile_context>

<pallas_src>
import functools

import jax
import jax.numpy as jnp
from jax import lax
from jax.experimental import pallas as pl
from jax.experimental.pallas import tpu as pltpu

_LANE = 128


def _kvl_kernel(node_t_ref, ei_ref, probs_ref, params_ref, out_ref,
                sum_d_ref, sum_d2_ref, sum_w_ref, sum_wp_ref, sum_wp2_ref,
                *, true_e):
    """Edge-tiled streaming kernel.

    node_t_ref  : [2, N]    f32  (row 0 = real voltage, row 1 = imag voltage)
    ei_ref      : [2, T]    i32  (row 0 = src, row 1 = dst; padded edges -> 0)
    probs_ref   : [1, T]    f32  (padded edges -> 0)
    params_ref  : [T, P]    f32  (padded edges -> 0)
    out_ref     : [1, 1]    f32
    scratch     : running sums, persistent across the edge-tile grid axis.
    """
    i = pl.program_id(0)
    n = node_t_ref.shape[1]

    @pl.when(i == 0)
    def _init():
        sum_d_ref[...] = jnp.zeros_like(sum_d_ref)
        sum_d2_ref[...] = jnp.zeros_like(sum_d2_ref)
        sum_w_ref[...] = jnp.zeros_like(sum_w_ref)
        sum_wp_ref[...] = jnp.zeros_like(sum_wp_ref)
        sum_wp2_ref[...] = jnp.zeros_like(sum_wp2_ref)

    probs = probs_ref[...]                                        # [1, T]
    src = ei_ref[0:1, :]                                          # [1, T]
    dst = ei_ref[1:2, :]                                          # [1, T]

    # ---- voltage-drop consistency (streaming moments) --------------------
    # Signed incidence built from a column iota (no [N, T] iota temp):
    # inc[n, e] = +1 if n == src[e], -1 if n == dst[e], else 0.
    # (Out-of-range indices silently contribute zero voltage, unlike torch.)
    iota_n = lax.broadcasted_iota(jnp.int32, (n, 1), 0)           # [N, 1]
    inc = ((iota_n == src).astype(jnp.float32)
           - (iota_n == dst).astype(jnp.float32))                 # [N, T]
    # (v_src - v_dst) for both components in one MXU pass: [2, N] @ [N, T].
    diff = jnp.dot(node_t_ref[...], inc,
                   preferred_element_type=jnp.float32)            # [2, T]
    d2 = jnp.sum(diff * diff, axis=0, keepdims=True)              # [1, T]
    drops = jnp.sqrt(d2) * probs                                  # [1, T]

    sum_d_ref[...] += jnp.sum(drops, keepdims=True)               # [1, 1]
    sum_d2_ref[...] += jnp.sum(drops * drops, keepdims=True)      # [1, 1]
    sum_w_ref[...] += jnp.sum(probs, keepdims=True)               # [1, 1]

    # ---- parameter consistency (streaming moments, native [E, P] layout) --
    pt = params_ref[...]                                          # [T, P]
    sum_wp_ref[...] += jnp.dot(probs, pt,
                               preferred_element_type=jnp.float32)        # [1, P]
    sum_wp2_ref[...] += jnp.dot(probs, pt * pt,
                                preferred_element_type=jnp.float32)       # [1, P]

    # ---- finalize ---------------------------------------------------------
    @pl.when(i == pl.num_programs(0) - 1)
    def _finalize():
        e_f = jnp.float32(true_e)
        sum_d = sum_d_ref[...]                                    # [1, 1]
        sum_d2 = sum_d2_ref[...]                                  # [1, 1]
        # torch.var default is unbiased (ddof=1); static divides folded at
        # trace time.  For E == 1 this yields NaN (0 * inf), matching torch.
        inv_em1 = jnp.float32(
            float("inf") if true_e == 1 else 1.0 / (true_e - 1))
        var_d = (sum_d2 - sum_d * sum_d / e_f) * inv_em1          # [1, 1]

        if true_e > 1:
            sum_w = sum_w_ref[...]                                # [1, 1]
            inv_w = 1.0 / (sum_w + 1e-6)                          # exact divide
            wp = sum_wp_ref[...]                                  # [1, P]
            wp2 = sum_wp2_ref[...]                                # [1, P]
            mean_p = wp * inv_w                                   # [1, P]
            # sum_e w (p - m)^2 = sum(w p^2) - 2 m sum(w p) + m^2 sum(w)
            per_dim = wp2 - 2.0 * mean_p * wp + mean_p * mean_p * sum_w
            loss_p = jnp.sum(per_dim, keepdims=True) * jnp.float32(
                1.0 / wp.shape[1])                                # [1, 1]
        else:
            # torch returns exactly 0 for the parameter term when E <= 1.
            loss_p = jnp.zeros((1, 1), jnp.float32)

        out_ref[...] = loss_p + var_d


def _pick_vmem_limit_bytes() -> int:
    """Generation-aware scoped-VMEM limit with headroom for compiler scratch."""
    try:
        cap = pltpu.get_tpu_info().vmem_capacity_bytes
        return int(min(96 * 2**20, max(16 * 2**20, cap - 16 * 2**20)))
    except Exception:
        return 32 * 2**20


def kirchhoff_voltage_law(node_features, edge_index, edge_probs, edge_params,
                          tolerance: float = 0.05, *, max_tile_edges: int = 1024):
    """JAX/Pallas equivalent of KirchhoffVoltageLaw.forward.

    `tolerance` is unused, matching the PyTorch module.  For E == 1 the result
    is NaN (torch.var with ddof=1 of a single element), mirroring torch.
    """
    edge_params = jnp.asarray(edge_params, dtype=jnp.float32)
    E, P = edge_params.shape
    if E == 0:
        return jnp.float32(0.0)

    # Node voltages as a lane-dense [2, N] slab (tiny: O(N) wrapper transpose).
    node_t = jnp.asarray(node_features, dtype=jnp.float32)[:, :2].T   # [2, N]
    N = node_t.shape[1]
    ei = jnp.asarray(edge_index, dtype=jnp.int32)                     # [2, E]
    probs = jnp.asarray(edge_probs, dtype=jnp.float32).reshape(1, E)  # [1, E]

    # Pad the edge axis to a lane/tile multiple; padded edges have prob 0,
    # src = dst = 0 and zero params, so they contribute nothing to the sums.
    # The true edge count is folded into the kernel as a static constant.
    e_pad = ((E + _LANE - 1) // _LANE) * _LANE
    tile = min(e_pad, ((max_tile_edges + _LANE - 1) // _LANE) * _LANE)
    e_pad = ((e_pad + tile - 1) // tile) * tile
    pad = e_pad - E
    if pad:
        ei = jnp.pad(ei, ((0, 0), (0, pad)))
        probs = jnp.pad(probs, ((0, 0), (0, pad)))
        edge_params = jnp.pad(edge_params, ((0, pad), (0, 0)))

    grid = (e_pad // tile,)
    kernel = functools.partial(_kvl_kernel, true_e=E)

    cost = pl.CostEstimate(
        flops=4 * N * e_pad + 4 * e_pad * P + 12 * e_pad,
        transcendentals=e_pad,
        bytes_accessed=4 * (node_t.size + ei.size + probs.size
                            + edge_params.size) + 4,
    )

    out = pl.pallas_call(
        kernel,
        out_shape=jax.ShapeDtypeStruct((1, 1), jnp.float32),
        grid_spec=pltpu.PrefetchScalarGridSpec(
            num_scalar_prefetch=0,
            grid=grid,
            in_specs=[
                pl.BlockSpec((2, N), lambda i: (0, 0)),       # node voltages
                pl.BlockSpec((2, tile), lambda i: (0, i)),    # edge_index
                pl.BlockSpec((1, tile), lambda i: (0, i)),    # edge_probs
                pl.BlockSpec((tile, P), lambda i: (i, 0)),    # edge_params
            ],
            out_specs=pl.BlockSpec((1, 1), lambda i: (0, 0)),
            scratch_shapes=[
                pltpu.VMEM((1, 1), jnp.float32),   # sum(d)
                pltpu.VMEM((1, 1), jnp.float32),   # sum(d^2)
                pltpu.VMEM((1, 1), jnp.float32),   # sum(w)
                pltpu.VMEM((1, P), jnp.float32),   # sum(w * p)
                pltpu.VMEM((1, P), jnp.float32),   # sum(w * p^2)
            ],
        ),
        compiler_params=pltpu.CompilerParams(
            dimension_semantics=("arbitrary",),
            vmem_limit_bytes=_pick_vmem_limit_bytes(),
        ),
        cost_estimate=cost,
    )(node_t, ei, probs, edge_params)
    return out[0, 0]


def _reference(node_features, edge_index, edge_probs, edge_params):
    """Pure-JAX reference mirroring the PyTorch math (for correctness check)."""
    E = edge_params.shape[0]
    w = edge_probs[:, None]
    mean_p = (edge_params * w).sum(0) / (w.sum() + 1e-6)
    loss_p = (((edge_params - mean_p) ** 2) * w).sum(0).mean()

    src, dst = edge_index[0], edge_index[1]
    d_re = node_features[src, 0] - node_features[dst, 0]
    d_im = node_features[src, 1] - node_features[dst, 1]
    drops = jnp.sqrt(d_re ** 2 + d_im ** 2) * edge_probs
    var_d = jnp.sum((drops - drops.mean()) ** 2) / (E - 1)
    return loss_p + var_d


if __name__ == "__main__":
    key = jax.random.PRNGKey(0)

    # Case 1: module-typical small graph (single edge tile).
    k1, k2, k3, k4 = jax.random.split(key, 4)
    N, F, E, P = 8, 4, 8, 4
    node_features = jax.random.normal(k1, (N, F), dtype=jnp.float32)
    edge_index = jax.random.randint(k2, (2, E), 0, N, dtype=jnp.int32)
    edge_probs = jax.nn.sigmoid(jax.random.normal(k3, (E,), dtype=jnp.float32))
    edge_params = jax.random.normal(k4, (E, P), dtype=jnp.float32)

    out = jax.block_until_ready(
        kirchhoff_voltage_law(node_features, edge_index, edge_probs, edge_params))
    ref = _reference(node_features, edge_index, edge_probs, edge_params)
    assert jnp.allclose(out, ref, rtol=1e-4, atol=1e-6), (out, ref)

    # Case 2: larger ragged graph exercising the multi-tile streaming path.
    k5, k6, k7, k8 = jax.random.split(jax.random.PRNGKey(0), 4)
    N2, F2, E2, P2 = 16, 4, 200, 3
    node_features2 = jax.random.normal(k5, (N2, F2), dtype=jnp.float32)
    edge_index2 = jax.random.randint(k6, (2, E2), 0, N2, dtype=jnp.int32)
    edge_probs2 = jax.nn.sigmoid(jax.random.normal(k7, (E2,), dtype=jnp.float32))
    edge_params2 = jax.random.normal(k8, (E2, P2), dtype=jnp.float32)

    out2 = jax.block_until_ready(
        kirchhoff_voltage_law(node_features2, edge_index2, edge_probs2,
                              edge_params2, max_tile_edges=128))
    ref2 = _reference(node_features2, edge_index2, edge_probs2, edge_params2)
    assert jnp.allclose(out2, ref2, rtol=1e-4, atol=1e-6), (out2, ref2)

    print("KERNEL_OK")
</pallas_src>

<mosaic_0001>
module attributes {stable_mosaic.version = 11 : i64} {
  func.func @_kvl_kernel(%arg0: i32, %arg1: memref<2x8xf32, #tpu.memory_space<vmem>>, %arg2: memref<2x128xi32, #tpu.memory_space<vmem>>, %arg3: memref<1x128xf32, #tpu.memory_space<vmem>>, %arg4: memref<128x4xf32, #tpu.memory_space<vmem>>, %arg5: memref<1x1xf32, #tpu.memory_space<vmem>>, %arg6: memref<1x1xf32, #tpu.memory_space<vmem>>, %arg7: memref<1x1xf32, #tpu.memory_space<vmem>>, %arg8: memref<1x1xf32, #tpu.memory_space<vmem>>, %arg9: memref<1x4xf32, #tpu.memory_space<vmem>>, %arg10: memref<1x4xf32, #tpu.memory_space<vmem>>) attributes {dimension_semantics = [#tpu.dimension_semantics<arbitrary>], iteration_bounds = array<i64: 1>, scalar_prefetch = 0 : i64, scratch_operands = 5 : i64, tpu.core_type = #tpu.core_type<tc>, window_params = [{pipeline_mode = #tpu.pipeline_mode<synchronous>, transform_indices = @transform_0, window_bounds = array<i64: 2, 8>}, {transform_indices = @transform_1, window_bounds = array<i64: 2, 128>}, {transform_indices = @transform_2, window_bounds = array<i64: 1, 128>}, {transform_indices = @transform_3, window_bounds = array<i64: 128, 4>}, {pipeline_mode = #tpu.pipeline_mode<synchronous>, transform_indices = @transform_4, window_bounds = array<i64: 1, 1>}]} {
    %c0_i32 = arith.constant 0 : i32
    %0 = arith.cmpi eq, %arg0, %c0_i32 : i32
    %1 = arith.extui %0 : i1 to i32
    %c0_i32_0 = arith.constant 0 : i32
    %2 = arith.cmpi ne, %1, %c0_i32_0 : i32
    scf.if %2 {
      %cst_37 = arith.constant 0.000000e+00 : f32
      %63 = vector.broadcast %cst_37 : f32 to vector<1x1xf32>
      %c0_38 = arith.constant 0 : index
      %c0_39 = arith.constant 0 : index
      %64 = vector.load %arg6[%c0_38, %c0_39] : memref<1x1xf32, #tpu.memory_space<vmem>>, vector<1x1xf32>
      tpu.vector_store %arg6[%c0_38, %c0_39], %63 {strides = array<i32>} : memref<1x1xf32, #tpu.memory_space<vmem>>, vector<1x1xf32>,
      %cst_40 = arith.constant 0.000000e+00 : f32
      %65 = vector.broadcast %cst_40 : f32 to vector<1x1xf32>
      %c0_41 = arith.constant 0 : index
      %c0_42 = arith.constant 0 : index
      %66 = vector.load %arg7[%c0_41, %c0_42] : memref<1x1xf32, #tpu.memory_space<vmem>>, vector<1x1xf32>
      tpu.vector_store %arg7[%c0_41, %c0_42], %65 {strides = array<i32>} : memref<1x1xf32, #tpu.memory_space<vmem>>, vector<1x1xf32>,
      %cst_43 = arith.constant 0.000000e+00 : f32
      %67 = vector.broadcast %cst_43 : f32 to vector<1x1xf32>
      %c0_44 = arith.constant 0 : index
      %c0_45 = arith.constant 0 : index
      %68 = vector.load %arg8[%c0_44, %c0_45] : memref<1x1xf32, #tpu.memory_space<vmem>>, vector<1x1xf32>
      tpu.vector_store %arg8[%c0_44, %c0_45], %67 {strides = array<i32>} : memref<1x1xf32, #tpu.memory_space<vmem>>, vector<1x1xf32>,
      %cst_46 = arith.constant 0.000000e+00 : f32
      %69 = vector.broadcast %cst_46 : f32 to vector<1x4xf32>
      %c0_47 = arith.constant 0 : index
      %c0_48 = arith.constant 0 : index
      %70 = vector.load %arg9[%c0_47, %c0_48] : memref<1x4xf32, #tpu.memory_space<vmem>>, vector<1x4xf32>
      tpu.vector_store %arg9[%c0_47, %c0_48], %69 {strides = array<i32>} : memref<1x4xf32, #tpu.memory_space<vmem>>, vector<1x4xf32>,
      %cst_49 = arith.constant 0.000000e+00 : f32
      %71 = vector.broadcast %cst_49 : f32 to vector<1x4xf32>
      %c0_50 = arith.constant 0 : index
      %c0_51 = arith.constant 0 : index
      %72 = vector.load %arg10[%c0_50, %c0_51] : memref<1x4xf32, #tpu.memory_space<vmem>>, vector<1x4xf32>
      tpu.vector_store %arg10[%c0_50, %c0_51], %71 {strides = array<i32>} : memref<1x4xf32, #tpu.memory_space<vmem>>, vector<1x4xf32>,
    } else {
    }
    %c0 = arith.constant 0 : index
    %c0_1 = arith.constant 0 : index
    %3 = vector.load %arg3[%c0, %c0_1] : memref<1x128xf32, #tpu.memory_space<vmem>>, vector<1x128xf32>
    %c0_2 = arith.constant 0 : index
    %c0_3 = arith.constant 0 : index
    %4 = vector.load %arg2[%c0_2, %c0_3] : memref<2x128xi32, #tpu.memory_space<vmem>>, vector<1x128xi32>
    %c1 = arith.constant 1 : index
    %c0_4 = arith.constant 0 : index
    %5 = vector.load %arg2[%c1, %c0_4] : memref<2x128xi32, #tpu.memory_space<vmem>>, vector<1x128xi32>
    %6 = tpu.iota {dimensions = array<i32: 0>} : vector<8x1xi32>
    %7 = vector.broadcast %6 : vector<8x1xi32> to vector<8x128xi32>
    %8 = vector.broadcast %4 : vector<1x128xi32> to vector<8x128xi32>
    %9 = arith.cmpi eq, %7, %8 : vector<8x128xi32>
    %10 = arith.extui %9 : vector<8x128xi1> to vector<8x128xi32>
    %11 = arith.sitofp %10 : vector<8x128xi32> to vector<8x128xf32>
    %12 = vector.broadcast %6 : vector<8x1xi32> to vector<8x128xi32>
    %13 = vector.broadcast %5 : vector<1x128xi32> to vector<8x128xi32>
    %14 = arith.cmpi eq, %12, %13 : vector<8x128xi32>
    %15 = arith.extui %14 : vector<8x128xi1> to vector<8x128xi32>
    %16 = arith.sitofp %15 : vector<8x128xi32> to vector<8x128xf32>
    %17 = arith.subf %11, %16 : vector<8x128xf32>
    %c0_5 = arith.constant 0 : index
    %c0_6 = arith.constant 0 : index
    %18 = vector.load %arg1[%c0_5, %c0_6] : memref<2x8xf32, #tpu.memory_space<vmem>>, vector<2x8xf32>
    %cst = arith.constant dense<0.000000e+00> : vector<2x128xf32>
    %19 = tpu.matmul %18, %17, %cst {dimension_numbers = #tpu.dot_dimension_numbers<[1], [0], [0], [1], [0, 0, 1, 1], [], []>} : vector<2x8xf32>, vector<8x128xf32>, vector<2x128xf32> -> vector<2x128xf32>
    %20 = arith.mulf %19, %19 : vector<2x128xf32>
    %cst_7 = arith.constant dense<0.000000e+00> : vector<128xf32>
    %21 = vector.multi_reduction <add>, %20, %cst_7 [0] : vector<2x128xf32> to vector<128xf32>
    %22 = vector.shape_cast %21 : vector<128xf32> to vector<1x128xf32>
    %23 = math.sqrt %22 : vector<1x128xf32>
    %24 = arith.mulf %23, %3 : vector<1x128xf32>
    %c0_8 = arith.constant 0 : index
    %c0_9 = arith.constant 0 : index
    %25 = vector.load %arg6[%c0_8, %c0_9] : memref<1x1xf32, #tpu.memory_space<vmem>>, vector<1x1xf32>
    %26 = vector.shape_cast %24 : vector<1x128xf32> to vector<1x1x128xf32>
    %cst_10 = arith.constant dense<0.000000e+00> : vector<1xf32>
    %27 = vector.multi_reduction <add>, %26, %cst_10 [1, 2] : vector<1x1x128xf32> to vector<1xf32>
    %28 = vector.shape_cast %27 : vector<1xf32> to vector<1x1x1xf32>
    %29 = vector.extract %28[0, 0, 0] : f32 from vector<1x1x1xf32>
    %30 = vector.broadcast %29 : f32 to vector<1x1xf32>
    %31 = arith.addf %25, %30 : vector<1x1xf32>
    %c0_11 = arith.constant 0 : index
    %c0_12 = arith.constant 0 : index
    %32 = vector.load %arg6[%c0_11, %c0_12] : memref<1x1xf32, #tpu.memory_space<vmem>>, vector<1x1xf32>
    tpu.vector_store %arg6[%c0_11, %c0_12], %31 {strides = array<i32>} : memref<1x1xf32, #tpu.memory_space<vmem>>, vector<1x1xf32>,
    %c0_13 = arith.constant 0 : index
    %c0_14 = arith.constant 0 : index
    %33 = vector.load %arg7[%c0_13, %c0_14] : memref<1x1xf32, #tpu.memory_space<vmem>>, vector<1x1xf32>
    %34 = arith.mulf %24, %24 : vector<1x128xf32>
    %35 = vector.shape_cast %34 : vector<1x128xf32> to vector<1x1x128xf32>
    %cst_15 = arith.constant dense<0.000000e+00> : vector<1xf32>
    %36 = vector.multi_reduction <add>, %35, %cst_15 [1, 2] : vector<1x1x128xf32> to vector<1xf32>
    %37 = vector.shape_cast %36 : vector<1xf32> to vector<1x1x1xf32>
    %38 = vector.extract %37[0, 0, 0] : f32 from vector<1x1x1xf32>
    %39 = vector.broadcast %38 : f32 to vector<1x1xf32>
    %40 = arith.addf %33, %39 : vector<1x1xf32>
    %c0_16 = arith.constant 0 : index
    %c0_17 = arith.constant 0 : index
    %41 = vector.load %arg7[%c0_16, %c0_17] : memref<1x1xf32, #tpu.memory_space<vmem>>, vector<1x1xf32>
    tpu.vector_store %arg7[%c0_16, %c0_17], %40 {strides = array<i32>} : memref<1x1xf32, #tpu.memory_space<vmem>>, vector<1x1xf32>,
    %c0_18 = arith.constant 0 : index
    %c0_19 = arith.constant 0 : index
    %42 = vector.load %arg8[%c0_18, %c0_19] : memref<1x1xf32, #tpu.memory_space<vmem>>, vector<1x1xf32>
    %43 = vector.shape_cast %3 : vector<1x128xf32> to vector<1x1x128xf32>
    %cst_20 = arith.constant dense<0.000000e+00> : vector<1xf32>
    %44 = vector.multi_reduction <add>, %43, %cst_20 [1, 2] : vector<1x1x128xf32> to vector<1xf32>
    %45 = vector.shape_cast %44 : vector<1xf32> to vector<1x1x1xf32>
    %46 = vector.extract %45[0, 0, 0] : f32 from vector<1x1x1xf32>
    %47 = vector.broadcast %46 : f32 to vector<1x1xf32>
    %48 = arith.addf %42, %47 : vector<1x1xf32>
    %c0_21 = arith.constant 0 : index
    %c0_22 = arith.constant 0 : index
    %49 = vector.load %arg8[%c0_21, %c0_22] : memref<1x1xf32, #tpu.memory_space<vmem>>, vector<1x1xf32>
    tpu.vector_store %arg8[%c0_21, %c0_22], %48 {strides = array<i32>} : memref<1x1xf32, #tpu.memory_space<vmem>>, vector<1x1xf32>,
    %c0_23 = arith.constant 0 : index
    %c0_24 = arith.constant 0 : index
    %50 = vector.load %arg4[%c0_23, %c0_24] : memref<128x4xf32, #tpu.memory_space<vmem>>, vector<128x4xf32>
    %c0_25 = arith.constant 0 : index
    %c0_26 = arith.constant 0 : index
    %51 = vector.load %arg9[%c0_25, %c0_26] : memref<1x4xf32, #tpu.memory_space<vmem>>, vector<1x4xf32>
    %cst_27 = arith.constant dense<0.000000e+00> : vector<1x4xf32>
    %52 = tpu.matmul %3, %50, %cst_27 {dimension_numbers = #tpu.dot_dimension_numbers<[1], [0], [0], [1], [0, 0, 1, 1], [], []>} : vector<1x128xf32>, vector<128x4xf32>, vector<1x4xf32> -> vector<1x4xf32>
    %53 = arith.addf %51, %52 : vector<1x4xf32>
    %c0_28 = arith.constant 0 : index
    %c0_29 = arith.constant 0 : index
    %54 = vector.load %arg9[%c0_28, %c0_29] : memref<1x4xf32, #tpu.memory_space<vmem>>, vector<1x4xf32>
    tpu.vector_store %arg9[%c0_28, %c0_29], %53 {strides = array<i32>} : memref<1x4xf32, #tpu.memory_space<vmem>>, vector<1x4xf32>,
    %c0_30 = arith.constant 0 : index
    %c0_31 = arith.constant 0 : index
    %55 = vector.load %arg10[%c0_30, %c0_31] : memref<1x4xf32, #tpu.memory_space<vmem>>, vector<1x4xf32>
    %56 = arith.mulf %50, %50 : vector<128x4xf32>
    %cst_32 = arith.constant dense<0.000000e+00> : vector<1x4xf32>
    %57 = tpu.matmul %3, %56, %cst_32 {dimension_numbers = #tpu.dot_dimension_numbers<[1], [0], [0], [1], [0, 0, 1, 1], [], []>} : vector<1x128xf32>, vector<128x4xf32>, vector<1x4xf32> -> vector<1x4xf32>
    %58 = arith.addf %55, %57 : vector<1x4xf32>
    %c0_33 = arith.constant 0 : index
    %c0_34 = arith.constant 0 : index
    %59 = vector.load %arg10[%c0_33, %c0_34] : memref<1x4xf32, #tpu.memory_space<vmem>>, vector<1x4xf32>
    tpu.vector_store %arg10[%c0_33, %c0_34], %58 {strides = array<i32>} : memref<1x4xf32, #tpu.memory_space<vmem>>, vector<1x4xf32>,
    %c0_i32_35 = arith.constant 0 : i32
    %60 = arith.cmpi eq, %arg0, %c0_i32_35 : i32
    %61 = arith.extui %60 : i1 to i32
    %c0_i32_36 = arith.constant 0 : i32
    %62 = arith.cmpi ne, %61, %c0_i32_36 : i32
    scf.if %62 {
      %c0_37 = arith.constant 0 : index
      %c0_38 = arith.constant 0 : index
      %63 = vector.load %arg6[%c0_37, %c0_38] : memref<1x1xf32, #tpu.memory_space<vmem>>, vector<1x1xf32>
      %c0_39 = arith.constant 0 : index
      %c0_40 = arith.constant 0 : index
      %64 = vector.load %arg7[%c0_39, %c0_40] : memref<1x1xf32, #tpu.memory_space<vmem>>, vector<1x1xf32>
      %65 = arith.mulf %63, %63 : vector<1x1xf32>
      %cst_41 = arith.constant 8.000000e+00 : f32
      %66 = vector.broadcast %cst_41 : f32 to vector<1x1xf32>
      %67 = arith.divf %65, %66 : vector<1x1xf32>
      %68 = arith.subf %64, %67 : vector<1x1xf32>
      %cst_42 = arith.constant 0.142857149 : f32
      %69 = vector.broadcast %cst_42 : f32 to vector<1x1xf32>
      %70 = arith.mulf %68, %69 : vector<1x1xf32>
      %c0_43 = arith.constant 0 : index
      %c0_44 = arith.constant 0 : index
      %71 = vector.load %arg8[%c0_43, %c0_44] : memref<1x1xf32, #tpu.memory_space<vmem>>, vector<1x1xf32>
      %cst_45 = arith.constant 9.99999997E-7 : f32
      %72 = vector.broadcast %cst_45 : f32 to vector<1x1xf32>
      %73 = arith.addf %71, %72 : vector<1x1xf32>
      %cst_46 = arith.constant 1.000000e+00 : f32
      %74 = vector.broadcast %cst_46 : f32 to vector<1x1xf32>
      %75 = arith.divf %74, %73 : vector<1x1xf32>
      %c0_47 = arith.constant 0 : index
      %c0_48 = arith.constant 0 : index
      %76 = vector.load %arg9[%c0_47, %c0_48] : memref<1x4xf32, #tpu.memory_space<vmem>>, vector<1x4xf32>
      %c0_49 = arith.constant 0 : index
      %c0_50 = arith.constant 0 : index
      %77 = vector.load %arg10[%c0_49, %c0_50] : memref<1x4xf32, #tpu.memory_space<vmem>>, vector<1x4xf32>
      %78 = vector.broadcast %75 : vector<1x1xf32> to vector<1x4xf32>
      %79 = arith.mulf %76, %78 : vector<1x4xf32>
      %cst_51 = arith.constant 2.000000e+00 : f32
      %80 = vector.broadcast %cst_51 : f32 to vector<1x4xf32>
      %81 = arith.mulf %80, %79 : vector<1x4xf32>
      %82 = arith.mulf %81, %76 : vector<1x4xf32>
      %83 = arith.subf %77, %82 : vector<1x4xf32>
      %84 = arith.mulf %79, %79 : vector<1x4xf32>
      %85 = vector.broadcast %71 : vector<1x1xf32> to vector<1x4xf32>
      %86 = arith.mulf %84, %85 : vector<1x4xf32>
      %87 = arith.addf %83, %86 : vector<1x4xf32>
      %88 = vector.shape_cast %87 : vector<1x4xf32> to vector<1x1x4xf32>
      %cst_52 = arith.constant dense<0.000000e+00> : vector<1xf32>
      %89 = vector.multi_reduction <add>, %88, %cst_52 [1, 2] : vector<1x1x4xf32> to vector<1xf32>
      %90 = vector.shape_cast %89 : vector<1xf32> to vector<1x1x1xf32>
      %91 = vector.extract %90[0, 0, 0] : f32 from vector<1x1x1xf32>
      %92 = vector.broadcast %91 : f32 to vector<1x1xf32>
      %cst_53 = arith.constant 2.500000e-01 : f32
      %93 = vector.broadcast %cst_53 : f32 to vector<1x1xf32>
      %94 = arith.mulf %92, %93 : vector<1x1xf32>
      %95 = arith.addf %94, %70 : vector<1x1xf32>
      %c0_54 = arith.constant 0 : index
      %c0_55 = arith.constant 0 : index
      %96 = vector.load %arg5[%c0_54, %c0_55] : memref<1x1xf32, #tpu.memory_space<vmem>>, vector<1x1xf32>
      tpu.vector_store %arg5[%c0_54, %c0_55], %95 {strides = array<i32>} : memref<1x1xf32, #tpu.memory_space<vmem>>, vector<1x1xf32>,
    } else {
    }
    return
  }
  func.func @transform_0(%arg0: i32) -> (i32, i32) {
    %c0_i32 = arith.constant 0 : i32
    %c0_i32_0 = arith.constant 0 : i32
    %c0_i32_1 = arith.constant 0 : i32
    return %c0_i32, %c0_i32_0 : i32, i32
  }
  func.func @transform_1(%arg0: i32) -> (i32, i32) {
    %c0_i32 = arith.constant 0 : i32
    %c0_i32_0 = arith.constant 0 : i32
    return %c0_i32, %arg0 : i32, i32
  }
  func.func @transform_2(%arg0: i32) -> (i32, i32) {
    %c0_i32 = arith.constant 0 : i32
    %c0_i32_0 = arith.constant 0 : i32
    return %c0_i32, %arg0 : i32, i32
  }
  func.func @transform_3(%arg0: i32) -> (i32, i32) {
    %c0_i32 = arith.constant 0 : i32
    %c0_i32_0 = arith.constant 0 : i32
    return %arg0, %c0_i32 : i32, i32
  }
  func.func @transform_4(%arg0: i32) -> (i32, i32) {
    %c0_i32 = arith.constant 0 : i32
    %c0_i32_0 = arith.constant 0 : i32
    %c0_i32_1 = arith.constant 0 : i32
    return %c0_i32, %c0_i32_0 : i32, i32
  }
}

</mosaic_0001>

<llo_original>
// kernel: tpu_custom_call.1
$region0: #{tpu_custom_call.1}
  #allocation0 [shape = 'u32[]', space=smem, size = 0x4, offset = 0x4, fixed_abs, tag = 'smem constant byte address 0x4 - core index']
  #allocation1 [shape = 'u32[144,128]{1,0:T(1,128)}', space=vmem, size = 0x12000, scoped, tag = 'internal scratch']
  #allocation2 [shape = 'f32[1,1]{1,0:T(1,128)}', space=vmem, size = 0x200, scoped, tag = 'scratch operand']
  #allocation3 [shape = 'f32[1,1]{1,0:T(1,128)}', space=vmem, size = 0x200, scoped, tag = 'scratch operand']
  #allocation4 [shape = 'f32[1,1]{1,0:T(1,128)}', space=vmem, size = 0x200, scoped, tag = 'scratch operand']
  #allocation5 [shape = 'f32[1,4]{1,0:T(1,128)}', space=vmem, size = 0x200, scoped, tag = 'scratch operand']
  #allocation6 [shape = 'f32[1,4]{1,0:T(1,128)}', space=vmem, size = 0x200, scoped, tag = 'scratch operand']
  %s0 = inlined_call_operand.vmem [shape: f32[2,8], index: 0, kind: input, shape index: {}]
  %s1 = inlined_call_operand.vmem [shape: s32[2,128], index: 1, kind: input, shape index: {}]
  %s2 = inlined_call_operand.vmem [shape: f32[1,128], index: 2, kind: input, shape index: {}]
  %s3 = inlined_call_operand.vmem [shape: f32[128,4], index: 3, kind: input, shape index: {}]
  %s4 = inlined_call_operand.hbm [shape: f32[1,1], index: 4, kind: output, shape index: {}]
  %s5 = sld [smem:[#allocation0]]
  $region34: #{tpu_custom_call.1} parent=0
    _
  %s7 = ssub.s32 1, %s5
  %s8 = scalar_select 0, %s7, %s5
  $region1: #{tpu_custom_call.1} parent=0
    #allocation7 [shape = 'u8[512]{0}', space=vmem, size = 0x400, scoped, tag = 'output window, operand 0, single buffered']
    #allocation8 [shape = 's32[1]{0}', space=sflag, size = 0x4, scoped, tag = 'scoped memory for tpu_custom_call.1']
    %9 = vsyncpa [#allocation8], 0
    // Predicated region
    $region2: #{tpu_custom_call.1} parent=1 // pred_check
      _
    $region3: #{tpu_custom_call.1} parent=1 // pred_check_branch
      %11 = sbr.rel (0) target = $region5
    $region4: #{tpu_custom_call.1} parent=1 // pred_region
      _
    $region5: #{tpu_custom_call.1} parent=1 // pred_fallthru
      _
    // Predicated region
    $region6: #{tpu_custom_call.1} parent=1 // pred_check
      _
    $region7: #{tpu_custom_call.1} parent=1 // pred_check_branch
      %13 = sbr.rel (0) target = $region9
    $region8: #{tpu_custom_call.1} parent=1 // pred_region
      _
    $region9: #{tpu_custom_call.1} parent=1 // pred_fallthru
      _
    // Predicated region
    $region10: #{tpu_custom_call.1} parent=1 // pred_check
      _
    $region11: #{tpu_custom_call.1} parent=1 // pred_check_branch
      %15 = sbr.rel (0) target = $region13
    $region12: #{tpu_custom_call.1} parent=1 // pred_region
      _
    $region13: #{tpu_custom_call.1} parent=1 // pred_fallthru
      _
    // Predicated region
    $region14: #{tpu_custom_call.1} parent=1 // pred_check
      _
    $region15: #{tpu_custom_call.1} parent=1 // pred_check_branch
      %17 = sbr.rel (0) target = $region17
    $region16: #{tpu_custom_call.1} parent=1 // pred_region
      _
    $region17: #{tpu_custom_call.1} parent=1 // pred_fallthru
      _
    %p18 = scmp.eq.s32.totalorder 0, 0
    // Predicated region
    $region18: #{tpu_custom_call.1} parent=1 // pred_check
      %p19 = pneg %p18
    $region19: #{tpu_custom_call.1} parent=1 // pred_check_branch
      %21 = sbr.rel (%p19) target = $region21
    $region20: #{tpu_custom_call.1} parent=1 // pred_region
      %vm22 = vcmask 0
      %23 = vst.msk [vmem:[#allocation2] sm:$0x1] %vm22, 0.0
      %24 = vst.msk [vmem:[#allocation3] sm:$0x1] %vm22, 0.0
      %25 = vst.msk [vmem:[#allocation4] sm:$0x1] %vm22, 0.0
      %vm26 = vcmask 24576
      %27 = vst.msk [vmem:[#allocation5] sm:$0x1] %vm26, 0.0
      %28 = vst.msk [vmem:[#allocation6] sm:$0x1] %vm26, 0.0
    $region21: #{tpu_custom_call.1} parent=1 // pred_fallthru
      _
    %v29 = vld [vmem:[%s2] sm:$0x1]
    %v30 = vld [vmem:[%s1] sm:$0x1]
    %v31 = vld [vmem:[%s1 + $0x1] sm:$0x1]
    %v32 = vlaneseq
    %v33 = vshrl.u32 %v32, 7
    %v34 = vlaneseq
    %v35 = vshrl.u32 %v34, 7
    %v36 = vsub.s32 0, %v35
    %v37 = vrot.slane %v30, %v36
    %vm38 = vcmp.eq.s32.totalorder %v33, %v37
    %v39 = vsel %vm38, 1, 0
    %v40 = vcvt.s32.f32 %v39
    %v41 = vlaneseq
    %v42 = vshrl.u32 %v41, 7
    %v43 = vsub.s32 0, %v42
    %v44 = vrot.slane %v31, %v43
    %vm45 = vcmp.eq.s32.totalorder %v33, %v44
    %v46 = vsel %vm45, 1, 0
    %v47 = vcvt.s32.f32 %v46
    %v48 = vsub.f32 %v40, %v47
    %v49 = vld [vmem:[%s0] sm:$0x3]
    %vm50 = vcmask 64512
    %v52 = vsel %vm50, %v49, 0
    %54 = vmatprep.subr.mxu0 0.0
    %55 = vmatpush1.msra.mxu0 %v48
    %56 = vmatprep.subr.mxu0 0.0
    %57 = vmatpush1.msra.mxu0 0.0
    %58 = vmatprep.subr.mxu0 0.0
    %59 = vmatpush1.msra.mxu0 0.0
    %60 = vmatprep.subr.mxu0 0.0
    %61 = vmatpush1.msra.mxu0 0.0
    %62 = vmatprep.subr.mxu0 0.0
    %63 = vmatpush1.msra.mxu0 0.0
    %64 = vmatprep.subr.mxu0 0.0
    %65 = vmatpush1.msra.mxu0 0.0
    %66 = vmatprep.subr.mxu0 0.0
    %67 = vmatpush1.msra.mxu0 0.0
    %68 = vmatprep.subr.mxu0 0.0
    %69 = vmatpush1.msra.mxu0 0.0
    %70 = vmatprep.subr.mxu0 0.0
    %71 = vmatpush1.msra.mxu0 0.0
    %72 = vmatprep.subr.mxu0 0.0
    %73 = vmatpush1.msra.mxu0 0.0
    %74 = vmatprep.subr.mxu0 0.0
    %75 = vmatpush1.msra.mxu0 0.0
    %76 = vmatprep.subr.mxu0 0.0
    %77 = vmatpush1.msra.mxu0 0.0
    %78 = vmatprep.subr.mxu0 0.0
    %79 = vmatpush1.msra.mxu0 0.0
    %80 = vmatprep.subr.mxu0 0.0
    %81 = vmatpush1.msra.mxu0 0.0
    %82 = vmatprep.subr.mxu0 0.0
    %83 = vmatpush1.msra.mxu0 0.0
    %84 = vmatprep.subr.mxu0 0.0
    %85 = vmatpush1.msra.mxu0 0.0
    %86 = vmatprep.subr.mxu0 0.0
    %87 = vmatpush1.msra.mxu0 0.0
    %88 = vmatprep.subr.mxu0 0.0
    %89 = vmatpush1.msra.mxu0 0.0
    %90 = vmatprep.subr.mxu0 0.0
    %91 = vmatpush1.msra.mxu0 0.0
    %92 = vmatprep.subr.mxu0 0.0
    %93 = vmatpush1.msra.mxu0 0.0
    %94 = vmatprep.subr.mxu0 0.0
    %95 = vmatpush1.msra.mxu0 0.0
    %96 = vmatprep.subr.mxu0 0.0
    %97 = vmatpush1.msra.mxu0 0.0
    %98 = vmatprep.subr.mxu0 0.0
    %99 = vmatpush1.msra.mxu0 0.0
    %100 = vmatprep.subr.mxu0 0.0
    %101 = vmatpush1.msra.mxu0 0.0
    %102 = vmatprep.subr.mxu0 0.0
    %103 = vmatpush1.msra.mxu0 0.0
    %104 = vmatprep.subr.mxu0 0.0
    %105 = vmatpush1.msra.mxu0 0.0
    %106 = vmatprep.subr.mxu0 0.0
    %107 = vmatpush1.msra.mxu0 0.0
    %108 = vmatprep.subr.mxu0 0.0
    %109 = vmatpush1.msra.mxu0 0.0
    %110 = vmatprep.subr.mxu0 0.0
    %111 = vmatpush1.msra.mxu0 0.0
    %112 = vmatprep.subr.mxu0 0.0
    %113 = vmatpush1.msra.mxu0 0.0
    %114 = vmatprep.subr.mxu0 0.0
    %115 = vmatpush1.msra.mxu0 0.0
    %116 = vmatprep.subr.mxu0 0.0
    %117 = vmatpush1.msra.mxu0 0.0
    %118 = vmatprep.mubr.f32.mxu0 0.0
    %119 = vmatmul.mubr.f32.gmra.mrb[0].mxu0 %v52
    %v120 = vpop.f32.mrb[0].mxu0
    %v121 = vadd.f32 0.0, %v120
    %v122 = vpop.f32.mrb[0].mxu0
    %123 = vdwg.mxu0
    %v124 = vmul.f32 %v121, %v121
    %vm125 = vcmask 1041408
    %v126 = vsel %vm125, %v124, 0.0
    %v127 = vrot.slane %v126, 4
    %v128 = vadd.f32 %v126, %v127
    %v129 = vrot.slane %v128, 2
    %v130 = vadd.f32 %v128, %v129
    %v131 = vrot.slane %v130, 1
    %v132 = vadd.f32 %v130, %v131
    %v133 = vrsqrt.pop %v132
    %v134 = vmul.f32 %v132, %v133
    %vm135 = vcmp.eq.f32.partialorder %v132, inf
    %v136 = vsel %vm135, %v132, %v134
    %vm137 = vcmp.eq.f32.partialorder %v132, 0.0
    %v138 = vand.u32 %v132, 2147483648
    %v139 = vsel %vm137, %v138, %v136
    %v140 = vmul.f32 %v139, %v29
    %v141 = vld [vmem:[#allocation2] sm:$0x1]
    %vm142 = vcmask 1040384
    %v143 = vsel %vm142, %v140, 0.0
    %144 = vadd.xlane.f32.xlu0 %v143
    %v145 = vpop.xlane.xlu0 %144
    %v146 = vrot.slane %v145, 4
    %v147 = vadd.f32 %v145, %v146
    %v148 = vrot.slane %v147, 2
    %v149 = vadd.f32 %v147, %v148
    %v150 = vrot.slane %v149, 1
    %v151 = vadd.f32 %v149, %v150
    %s152 = vtos %v151
    %v153 = vstv %s152
    %v154 = vadd.f32 %v141, %v153
    %vm155 = vcmask 0
    %156 = vst.msk [vmem:[#allocation2] sm:$0x1] %vm155, %v154
    %v157 = vld [vmem:[#allocation3] sm:$0x1]
    %v158 = vmul.f32 %v140, %v140
    %v159 = vsel %vm142, %v158, 0.0
    %160 = vadd.xlane.f32.xlu0 %v159
    %v161 = vpop.xlane.xlu0 %160
    %v162 = vrot.slane %v161, 4
    %v163 = vadd.f32 %v161, %v162
    %v164 = vrot.slane %v163, 2
    %v165 = vadd.f32 %v163, %v164
    %v166 = vrot.slane %v165, 1
    %v167 = vadd.f32 %v165, %v166
    %s168 = vtos %v167
    %v169 = vstv %s168
    %v170 = vadd.f32 %v157, %v169
    %171 = vst.msk [vmem:[#allocation3] sm:$0x1] %vm155, %v170
    %v172 = vld [vmem:[#allocation4] sm:$0x1]
    %v173 = vsel %vm142, %v29, 0.0
    %174 = vadd.xlane.f32.xlu0 %v173
    %v175 = vpop.xlane.xlu0 %174
    %v176 = vrot.slane %v175, 4
    %v177 = vadd.f32 %v175, %v176
    %v178 = vrot.slane %v177, 2
    %v179 = vadd.f32 %v177, %v178
    %v180 = vrot.slane %v179, 1
    %v181 = vadd.f32 %v179, %v180
    %s182 = vtos %v181
    %v183 = vstv %s182
    %v184 = vadd.f32 %v172, %v183
    %185 = vst.msk [vmem:[#allocation4] sm:$0x1] %vm155, %v184
    %v186 = vld [vmem:[%s3] sm:$0xff]
    %v187 = vld [vmem:[%s3 + $0x8] sm:$0xff]
    %v188 = vld [vmem:[%s3 + $0x10] sm:$0xff]
    %v189 = vld [vmem:[%s3 + $0x18] sm:$0xff]
    %v190 = vld [vmem:[%s3 + $0x20] sm:$0xff]
    %v191 = vld [vmem:[%s3 + $0x28] sm:$0xff]
    %v192 = vld [vmem:[%s3 + $0x30] sm:$0xff]
    %v193 = vld [vmem:[%s3 + $0x38] sm:$0xff]
    %v194 = vld [vmem:[%s3 + $0x40] sm:$0xff]
    %v195 = vld [vmem:[%s3 + $0x48] sm:$0xff]
    %v196 = vld [vmem:[%s3 + $0x50] sm:$0xff]
    %v197 = vld [vmem:[%s3 + $0x58] sm:$0xff]
    %v198 = vld [vmem:[%s3 + $0x60] sm:$0xff]
    %v199 = vld [vmem:[%s3 + $0x68] sm:$0xff]
    %v200 = vld [vmem:[%s3 + $0x70] sm:$0xff]
    %v201 = vld [vmem:[%s3 + $0x78] sm:$0xff]
    %v202 = vld [vmem:[#allocation5] sm:$0x1]
    %203 = vmatprep.subr.mxu0 0.0
    %204 = vmatpush1.msra.mxu0 %v186
    %205 = vmatprep.subr.mxu0 0.0
    %206 = vmatpush1.msra.mxu0 %v187
    %207 = vmatprep.subr.mxu0 0.0
    %208 = vmatpush1.msra.mxu0 %v188
    %209 = vmatprep.subr.mxu0 0.0
    %210 = vmatpush1.msra.mxu0 %v189
    %211 = vmatprep.subr.mxu0 0.0
    %212 = vmatpush1.msra.mxu0 %v190
    %213 = vmatprep.subr.mxu0 0.0
    %214 = vmatpush1.msra.mxu0 %v191
    %215 = vmatprep.subr.mxu0 0.0
    %216 = vmatpush1.msra.mxu0 %v192
    %217 = vmatprep.subr.mxu0 0.0
    %218 = vmatpush1.msra.mxu0 %v193
    %219 = vmatprep.subr.mxu0 0.0
    %220 = vmatpush1.msra.mxu0 %v194
    %221 = vmatprep.subr.mxu0 0.0
    %222 = vmatpush1.msra.mxu0 %v195
    %223 = vmatprep.subr.mxu0 0.0
    %224 = vmatpush1.msra.mxu0 %v196
    %225 = vmatprep.subr.mxu0 0.0
    %226 = vmatpush1.msra.mxu0 %v197
    %227 = vmatprep.subr.mxu0 0.0
    %228 = vmatpush1.msra.mxu0 %v198
    %229 = vmatprep.subr.mxu0 0.0
    %230 = vmatpush1.msra.mxu0 %v199
    %231 = vmatprep.subr.mxu0 0.0
    %232 = vmatpush1.msra.mxu0 %v200
    %233 = vmatprep.subr.mxu0 0.0
    %234 = vmatpush1.msra.mxu0 %v201
    %235 = vmatprep.subr.mxu0 0.0
    %236 = vmatpush1.msra.mxu0 0.0
    %237 = vmatprep.subr.mxu0 0.0
    %238 = vmatpush1.msra.mxu0 0.0
    %239 = vmatprep.subr.mxu0 0.0
    %240 = vmatpush1.msra.mxu0 0.0
    %241 = vmatprep.subr.mxu0 0.0
    %242 = vmatpush1.msra.mxu0 0.0
    %243 = vmatprep.subr.mxu0 0.0
    %244 = vmatpush1.msra.mxu0 0.0
    %245 = vmatprep.subr.mxu0 0.0
    %246 = vmatpush1.msra.mxu0 0.0
    %247 = vmatprep.subr.mxu0 0.0
    %248 = vmatpush1.msra.mxu0 0.0
    %249 = vmatprep.subr.mxu0 0.0
    %250 = vmatpush1.msra.mxu0 0.0
    %251 = vmatprep.subr.mxu0 0.0
    %252 = vmatpush1.msra.mxu0 0.0
    %253 = vmatprep.subr.mxu0 0.0
    %254 = vmatpush1.msra.mxu0 0.0
    %255 = vmatprep.subr.mxu0 0.0
    %256 = vmatpush1.msra.mxu0 0.0
    %257 = vmatprep.subr.mxu0 0.0
    %258 = vmatpush1.msra.mxu0 0.0
    %259 = vmatprep.subr.mxu0 0.0
    %260 = vmatpush1.msra.mxu0 0.0
    %261 = vmatprep.subr.mxu0 0.0
    %262 = vmatpush1.msra.mxu0 0.0
    %263 = vmatprep.subr.mxu0 0.0
    %264 = vmatpush1.msra.mxu0 0.0
    %265 = vmatprep.subr.mxu0 0.0
    %266 = vmatpush1.msra.mxu0 0.0
    %267 = vmatprep.mubr.f32.mxu0 0.0
    %268 = vmatmul.mubr.f32.gmra.mrb[0].mxu0 %v29
    %v269 = vpop.f32.mrb[0].mxu0
    %v270 = vadd.f32 0.0, %v269
    %v271 = vpop.f32.mrb[0].mxu0
    %272 = vdwg.mxu0
    %v273 = vadd.f32 %v202, %v270
    %vm274 = vcmask 24576
    %275 = vst.msk [vmem:[#allocation5] sm:$0x1] %vm274, %v273
    %v276 = vld [vmem:[#allocation6] sm:$0x1]
    %v277 = vmul.f32 %v186, %v186
    %v278 = vmul.f32 %v187, %v187
    %v279 = vmul.f32 %v188, %v188
    %v280 = vmul.f32 %v189, %v189
    %v281 = vmul.f32 %v190, %v190
    %v282 = vmul.f32 %v191, %v191
    %v283 = vmul.f32 %v192, %v192
    %v284 = vmul.f32 %v193, %v193
    %v285 = vmul.f32 %v194, %v194
    %v286 = vmul.f32 %v195, %v195
    %v287 = vmul.f32 %v196, %v196
    %v288 = vmul.f32 %v197, %v197
    %v289 = vmul.f32 %v198, %v198
    %v290 = vmul.f32 %v199, %v199
    %v291 = vmul.f32 %v200, %v200
    %v292 = vmul.f32 %v201, %v201
    %293 = vmatprep.subr.mxu0 0.0
    %294 = vmatpush1.msra.mxu0 %v277
    %295 = vmatprep.subr.mxu0 0.0
    %296 = vmatpush1.msra.mxu0 %v278
    %297 = vmatprep.subr.mxu0 0.0
    %298 = vmatpush1.msra.mxu0 %v279
    %299 = vmatprep.subr.mxu0 0.0
    %300 = vmatpush1.msra.mxu0 %v280
    %301 = vmatprep.subr.mxu0 0.0
    %302 = vmatpush1.msra.mxu0 %v281
    %303 = vmatprep.subr.mxu0 0.0
    %304 = vmatpush1.msra.mxu0 %v282
    %305 = vmatprep.subr.mxu0 0.0
    %306 = vmatpush1.msra.mxu0 %v283
    %307 = vmatprep.subr.mxu0 0.0
    %308 = vmatpush1.msra.mxu0 %v284
    %309 = vmatprep.subr.mxu0 0.0
    %310 = vmatpush1.msra.mxu0 %v285
    %311 = vmatprep.subr.mxu0 0.0
    %312 = vmatpush1.msra.mxu0 %v286
    %313 = vmatprep.subr.mxu0 0.0
    %314 = vmatpush1.msra.mxu0 %v287
    %315 = vmatprep.subr.mxu0 0.0
    %316 = vmatpush1.msra.mxu0 %v288
    %317 = vmatprep.subr.mxu0 0.0
    %318 = vmatpush1.msra.mxu0 %v289
    %319 = vmatprep.subr.mxu0 0.0
    %320 = vmatpush1.msra.mxu0 %v290
    %321 = vmatprep.subr.mxu0 0.0
    %322 = vmatpush1.msra.mxu0 %v291
    %323 = vmatprep.subr.mxu0 0.0
    %324 = vmatpush1.msra.mxu0 %v292
    %325 = vmatprep.subr.mxu0 0.0
    %326 = vmatpush1.msra.mxu0 0.0
    %327 = vmatprep.subr.mxu0 0.0
    %328 = vmatpush1.msra.mxu0 0.0
    %329 = vmatprep.subr.mxu0 0.0
    %330 = vmatpush1.msra.mxu0 0.0
    %331 = vmatprep.subr.mxu0 0.0
    %332 = vmatpush1.msra.mxu0 0.0
    %333 = vmatprep.subr.mxu0 0.0
    %334 = vmatpush1.msra.mxu0 0.0
    %335 = vmatprep.subr.mxu0 0.0
    %336 = vmatpush1.msra.mxu0 0.0
    %337 = vmatprep.subr.mxu0 0.0
    %338 = vmatpush1.msra.mxu0 0.0
    %339 = vmatprep.subr.mxu0 0.0
    %340 = vmatpush1.msra.mxu0 0.0
    %341 = vmatprep.subr.mxu0 0.0
    %342 = vmatpush1.msra.mxu0 0.0
    %343 = vmatprep.subr.mxu0 0.0
    %344 = vmatpush1.msra.mxu0 0.0
    %345 = vmatprep.subr.mxu0 0.0
    %346 = vmatpush1.msra.mxu0 0.0
    %347 = vmatprep.subr.mxu0 0.0
    %348 = vmatpush1.msra.mxu0 0.0
    %349 = vmatprep.subr.mxu0 0.0
    %350 = vmatpush1.msra.mxu0 0.0
    %351 = vmatprep.subr.mxu0 0.0
    %352 = vmatpush1.msra.mxu0 0.0
    %353 = vmatprep.subr.mxu0 0.0
    %354 = vmatpush1.msra.mxu0 0.0
    %355 = vmatprep.subr.mxu0 0.0
    %356 = vmatpush1.msra.mxu0 0.0
    %357 = vmatprep.mubr.f32.mxu0 0.0
    %358 = vmatmul.mubr.f32.gmra.mrb[0].mxu0 %v29
    %v359 = vpop.f32.mrb[0].mxu0
    %v360 = vadd.f32 0.0, %v359
    %v361 = vpop.f32.mrb[0].mxu0
    %362 = vdwg.mxu0
    %v363 = vadd.f32 %v276, %v360
    %364 = vst.msk [vmem:[#allocation6] sm:$0x1] %vm274, %v363
    // Predicated region
    $region22: #{tpu_custom_call.1} parent=1 // pred_check
      %p365 = pneg %p18
    $region23: #{tpu_custom_call.1} parent=1 // pred_check_branch
      %367 = sbr.rel (%p365) target = $region25
    $region24: #{tpu_custom_call.1} parent=1 // pred_region
      %v368 = vld [vmem:[#allocation2] sm:$0x1]
      %v369 = vld [vmem:[#allocation3] sm:$0x1]
      %v370 = vmul.f32 %v368, %v368
      %v371 = vrcp.pop 8.0
      %v372 = vmul.f32 %v370, %v371
      %v373 = vsub.f32 %v369, %v372
      %v374 = vmul.f32 %v373, 0.14285715
      %v375 = vld [vmem:[#allocation4] sm:$0x1]
      %v376 = vadd.f32 %v375, 1e-06
      %v377 = vrcp.pop %v376
      %v378 = vmul.f32 1.0, %v377
      %v379 = vld [vmem:[#allocation5] sm:$0x1]
      %v380 = vld [vmem:[#allocation6] sm:$0x1]
      %382 = vset.pattern.permute.xlu0 0
      %383 = vperm.xlu0 %382, %v378
      %v384 = vpop.permute.xlu0 %383
      %v386 = vlaneseq
      %v387 = vshrl.u32 %v386, 7
      %v388 = vsub.s32 0, %v387
      %v389 = vrot.slane %v384, %v388
      %v390 = vmul.f32 %v379, %v389
      %v391 = vmul.f32 %v390, 2.0
      %v392 = vmul.f32 %v391, %v379
      %v393 = vsub.f32 %v380, %v392
      %v394 = vmul.f32 %v390, %v390
      %396 = vset.pattern.permute.xlu0 0
      %397 = vperm.xlu0 %396, %v375
      %v398 = vpop.permute.xlu0 %397
      %v400 = vlaneseq
      %v401 = vshrl.u32 %v400, 7
      %v402 = vsub.s32 0, %v401
      %v403 = vrot.slane %v398, %v402
      %v404 = vmul.f32 %v394, %v403
      %v405 = vadd.f32 %v393, %v404
      %v406 = vsel %vm274, %v405, 0.0
      %407 = vadd.xlane.f32.xlu0 %v406
      %v408 = vpop.xlane.xlu0 %407
      %v409 = vrot.slane %v408, 4
      %v410 = vadd.f32 %v408, %v409
      %v411 = vrot.slane %v410, 2
      %v412 = vadd.f32 %v410, %v411
      %v413 = vrot.slane %v412, 1
      %v414 = vadd.f32 %v412, %v413
      %s415 = vtos %v414
      %v416 = vstv %s415
      %v417 = vmul.f32 %v416, 0.25
      %v418 = vadd.f32 %v417, %v374
      %419 = vst.msk [vmem:[#allocation7] sm:$0x1] %vm155, %v418
    $region25: #{tpu_custom_call.1} parent=1 // pred_fallthru
      _
    // Predicated region
    $region26: #{tpu_custom_call.1} parent=1 // pred_check
      _
    $region27: #{tpu_custom_call.1} parent=1 // pred_check_branch
      %421 = sbr.rel (0) target = $region29
    $region28: #{tpu_custom_call.1} parent=1 // pred_region
      %s423 = ssub.s32 16, 16
      %424 = vsyncadd [#allocation8], %s423
      %s426 = sshll.u32 [#allocation7], 4
      %s427 = int_to_ptr.vmem [resolvable:$true] %s426
      %429 = dma.vmem_to_hbm [thread:$0]  %s427, 16, %s4, [#allocation8]
    $region29: #{tpu_custom_call.1} parent=1 // pred_fallthru
      _
    // Predicated region
    $region30: #{tpu_custom_call.1} parent=1 // pred_check
      _
    $region31: #{tpu_custom_call.1} parent=1 // pred_check_branch
      %431 = sbr.rel (0) target = $region33
    $region32: #{tpu_custom_call.1} parent=1 // pred_region
      %432 = dma.done [#allocation8], 16
    $region33: #{tpu_custom_call.1} parent=1 // pred_fallthru
      _
    %433 = vsyncpa [#allocation8], 1

</llo_original>
